<compile_context>
chip_gen: v7x
topology: tpu7x:2x2x1
jax: 0.10.0
libtpu: 0.0.40
codegen_flags: <defaults>
</compile_context>

<pallas_src>
import jax
import jax.numpy as jnp
from jax.experimental import pallas as pl
from jax.experimental.pallas import tpu as pltpu


def _round_up(x, m):
    return (x + m - 1) // m * m


def sam0_kernel(x_ref, w1_ref, b1_ref, w2t_ref, b2t_ref, ot_ref):
    # fc1 + ReLU: bf16 MXU inputs, f32 accumulation.
    h = jnp.dot(x_ref[...], w1_ref[...], preferred_element_type=jnp.float32)
    h = jnp.maximum(h + b1_ref[...], 0.0)            # (TB, 32) + (1, 32)

    # fc2 computed transposed: y_t[o, m] = sum_k w2t[o, k] * h[m, k]
    # (same contraction pattern as q @ k^T) so the output block is (O, TB),
    # i.e. batch in the lane dimension -> lane-dense stores.
    y_t = jax.lax.dot_general(
        w2t_ref[...], h.astype(jnp.bfloat16),
        dimension_numbers=(((1,), (1,)), ((), ())),
        preferred_element_type=jnp.float32,
    )                                                 # (O, TB)
    ot_ref[...] = jnp.tanh(y_t + b2t_ref[...])        # (O, TB) + (O, 1)


def sam0_forward(x, w1, b1, w2, b2, *, block_b=2048):
    """Fused SAM0 forward: tanh(relu(x @ w1 + b1) @ w2 + b2) -> (B, 2) f32.

    x: (B, D); w1: (D, 32); b1: (32,) or (1, 32); w2: (32, 2); b2: (2,) or (1, 2).
    x may be any float dtype; it is cast to bf16 for the HBM read / MXU
    (ideally the caller already stores x in bf16).
    """
    B, D = x.shape
    H = w1.shape[1]
    O = w2.shape[1]

    b1 = jnp.asarray(b1, jnp.float32).reshape(1, H)
    # Second layer stored transposed so the kernel output is (O, B)-layout.
    w2_t = jnp.asarray(w2, jnp.float32).T.astype(jnp.bfloat16)   # (O, H)
    b2_t = jnp.asarray(b2, jnp.float32).reshape(1, O).T          # (O, 1)

    # bf16 for the dominant HBM read + native MXU path; f32 accumulation.
    x_bf = x.astype(jnp.bfloat16)
    w1_bf = jnp.asarray(w1, jnp.float32).astype(jnp.bfloat16)

    # Batch tile: multiple of 8 (sublanes); multiple of 128 when tiling so the
    # transposed output tile is lane-dense/unmasked. At TB=2048 the
    # double-buffered traffic (x: 2*TB*D*2B, y: 2*8*TB*4B) is ~0.2 MiB — far
    # under v7x's 64 MiB physical / 32 MiB scoped VMEM.
    block_b = max(128, _round_up(block_b, 128))
    TB = block_b if B >= block_b else _round_up(B, 8)
    Bp = _round_up(B, TB)
    if Bp != B:
        x_bf = jnp.pad(x_bf, ((0, Bp - B), (0, 0)))

    y_t = pl.pallas_call(
        sam0_kernel,
        out_shape=jax.ShapeDtypeStruct((O, Bp), jnp.float32),
        grid_spec=pl.GridSpec(
            grid=(Bp // TB,),
            in_specs=[
                pl.BlockSpec((TB, D), lambda i: (i, 0)),   # x: batch-tiled
                pl.BlockSpec((D, H), lambda i: (0, 0)),    # w1: VMEM-resident
                pl.BlockSpec((1, H), lambda i: (0, 0)),    # b1: VMEM-resident
                pl.BlockSpec((O, H), lambda i: (0, 0)),    # w2^T: VMEM-resident
                pl.BlockSpec((O, 1), lambda i: (0, 0)),    # b2^T: VMEM-resident
            ],
            out_specs=pl.BlockSpec((O, TB), lambda i: (0, i)),
        ),
        compiler_params=pltpu.CompilerParams(
            # Batch tiles are independent -> sharded across v7x's 2 TensorCores.
            dimension_semantics=("parallel",),
            vmem_limit_bytes=32 * 1024 * 1024,
        ),
    )(x_bf, w1_bf, b1, w2_t, b2_t)

    # Drop batch padding and return in the PyTorch (B, 2) layout.
    return y_t[:, :B].T


def init_params(key, input_dim, hidden=32, out=2):
    # Deterministic init mimicking PyTorch nn.Linear (uniform +/- 1/sqrt(fan_in)).
    k1, k2, k3, k4 = jax.random.split(key, 4)
    bound1 = 1.0 / jnp.sqrt(input_dim)
    bound2 = 1.0 / jnp.sqrt(hidden)
    w1 = jax.random.uniform(k1, (input_dim, hidden), jnp.float32, -bound1, bound1)
    b1 = jax.random.uniform(k2, (1, hidden), jnp.float32, -bound1, bound1)
    w2 = jax.random.uniform(k3, (hidden, out), jnp.float32, -bound2, bound2)
    b2 = jax.random.uniform(k4, (1, out), jnp.float32, -bound2, bound2)
    return w1, b1, w2, b2


def _reference(x, w1, b1, w2, b2):
    h = jnp.maximum(x @ w1 + b1, 0.0)
    return jnp.tanh(h @ w2 + b2)


if __name__ == "__main__":
    key = jax.random.PRNGKey(0)
    k_x, k_p, k_x2 = jax.random.split(key, 3)

    input_dim = 16
    w1, b1, w2, b2 = init_params(k_p, input_dim)

    # Small case (single tile).
    batch = 8
    x = jax.random.normal(k_x, (batch, input_dim), jnp.float32)
    y = sam0_forward(x, w1, b1, w2, b2)
    jax.block_until_ready(y)
    y_ref = _reference(x, w1, b1, w2, b2)
    assert y.shape == (batch, 2)
    # bf16 MXU inputs -> loose tolerance vs the f32 reference.
    assert jnp.allclose(y, y_ref, atol=5e-2, rtol=0.0)

    # Multi-tile case exercising batch tiling + padding + parallel grid axis.
    batch2 = 300
    x2 = jax.random.normal(k_x2, (batch2, input_dim), jnp.float32)
    y2 = sam0_forward(x2, w1, b1, w2, b2, block_b=128)
    jax.block_until_ready(y2)
    y2_ref = _reference(x2, w1, b1, w2, b2)
    assert y2.shape == (batch2, 2)
    assert jnp.allclose(y2, y2_ref, atol=5e-2, rtol=0.0)

    print("KERNEL_OK")
</pallas_src>

<mosaic_0001>
module attributes {stable_mosaic.version = 11 : i64} {
  func.func @sam0_kernel(%arg0: i32, %arg1: memref<8x16xbf16, #tpu.memory_space<vmem>>, %arg2: memref<16x32xbf16, #tpu.memory_space<vmem>>, %arg3: memref<1x32xf32, #tpu.memory_space<vmem>>, %arg4: memref<2x32xbf16, #tpu.memory_space<vmem>>, %arg5: memref<2x1xf32, #tpu.memory_space<vmem>>, %arg6: memref<2x8xf32, #tpu.memory_space<vmem>>) attributes {dimension_semantics = [#tpu.dimension_semantics<parallel>], iteration_bounds = array<i64: 1>, scalar_prefetch = 0 : i64, scratch_operands = 0 : i64, tpu.core_type = #tpu.core_type<tc>, window_params = [{transform_indices = @transform_0, window_bounds = array<i64: 8, 16>}, {pipeline_mode = #tpu.pipeline_mode<synchronous>, transform_indices = @transform_1, window_bounds = array<i64: 16, 32>}, {pipeline_mode = #tpu.pipeline_mode<synchronous>, transform_indices = @transform_2, window_bounds = array<i64: 1, 32>}, {pipeline_mode = #tpu.pipeline_mode<synchronous>, transform_indices = @transform_3, window_bounds = array<i64: 2, 32>}, {pipeline_mode = #tpu.pipeline_mode<synchronous>, transform_indices = @transform_4, window_bounds = array<i64: 2, 1>}, {transform_indices = @transform_5, window_bounds = array<i64: 2, 8>}]} {
    %c0 = arith.constant 0 : index
    %c0_0 = arith.constant 0 : index
    %0 = vector.load %arg1[%c0, %c0_0] : memref<8x16xbf16, #tpu.memory_space<vmem>>, vector<8x16xbf16>
    %c0_1 = arith.constant 0 : index
    %c0_2 = arith.constant 0 : index
    %1 = vector.load %arg2[%c0_1, %c0_2] : memref<16x32xbf16, #tpu.memory_space<vmem>>, vector<16x32xbf16>
    %cst = arith.constant dense<0.000000e+00> : vector<8x32xf32>
    %2 = tpu.matmul %0, %1, %cst {dimension_numbers = #tpu.dot_dimension_numbers<[1], [0], [0], [1], [0, 0, 1, 1], [], []>} : vector<8x16xbf16>, vector<16x32xbf16>, vector<8x32xf32> -> vector<8x32xf32>
    %c0_3 = arith.constant 0 : index
    %c0_4 = arith.constant 0 : index
    %3 = vector.load %arg3[%c0_3, %c0_4] : memref<1x32xf32, #tpu.memory_space<vmem>>, vector<1x32xf32>
    %4 = vector.broadcast %3 : vector<1x32xf32> to vector<8x32xf32>
    %5 = arith.addf %2, %4 : vector<8x32xf32>
    %cst_5 = arith.constant 0.000000e+00 : f32
    %6 = vector.broadcast %cst_5 : f32 to vector<8x32xf32>
    %7 = arith.maximumf %5, %6 : vector<8x32xf32>
    %c0_6 = arith.constant 0 : index
    %c0_7 = arith.constant 0 : index
    %8 = vector.load %arg4[%c0_6, %c0_7] : memref<2x32xbf16, #tpu.memory_space<vmem>>, vector<2x32xbf16>
    %9 = arith.truncf %7 : vector<8x32xf32> to vector<8x32xbf16>
    %cst_8 = arith.constant dense<0.000000e+00> : vector<2x8xf32>
    %10 = tpu.matmul %8, %9, %cst_8 {dimension_numbers = #tpu.dot_dimension_numbers<[1], [1], [0], [0], [0, 0, 1, 0], [], []>} : vector<2x32xbf16>, vector<8x32xbf16>, vector<2x8xf32> -> vector<2x8xf32>
    %c0_9 = arith.constant 0 : index
    %c0_10 = arith.constant 0 : index
    %11 = vector.load %arg5[%c0_9, %c0_10] : memref<2x1xf32, #tpu.memory_space<vmem>>, vector<2x1xf32>
    %12 = vector.broadcast %11 : vector<2x1xf32> to vector<2x8xf32>
    %13 = arith.addf %10, %12 : vector<2x8xf32>
    %14 = math.tanh %13 : vector<2x8xf32>
    %c0_11 = arith.constant 0 : index
    %c0_12 = arith.constant 0 : index
    %15 = vector.load %arg6[%c0_11, %c0_12] : memref<2x8xf32, #tpu.memory_space<vmem>>, vector<2x8xf32>
    tpu.vector_store %arg6[%c0_11, %c0_12], %14 {strides = array<i32>} : memref<2x8xf32, #tpu.memory_space<vmem>>, vector<2x8xf32>,
    return
  }
  func.func @transform_0(%arg0: i32) -> (i32, i32) {
    %c0_i32 = arith.constant 0 : i32
    %c0_i32_0 = arith.constant 0 : i32
    return %arg0, %c0_i32 : i32, i32
  }
  func.func @transform_1(%arg0: i32) -> (i32, i32) {
    %c0_i32 = arith.constant 0 : i32
    %c0_i32_0 = arith.constant 0 : i32
    %c0_i32_1 = arith.constant 0 : i32
    return %c0_i32, %c0_i32_0 : i32, i32
  }
  func.func @transform_2(%arg0: i32) -> (i32, i32) {
    %c0_i32 = arith.constant 0 : i32
    %c0_i32_0 = arith.constant 0 : i32
    %c0_i32_1 = arith.constant 0 : i32
    return %c0_i32, %c0_i32_0 : i32, i32
  }
  func.func @transform_3(%arg0: i32) -> (i32, i32) {
    %c0_i32 = arith.constant 0 : i32
    %c0_i32_0 = arith.constant 0 : i32
    %c0_i32_1 = arith.constant 0 : i32
    return %c0_i32, %c0_i32_0 : i32, i32
  }
  func.func @transform_4(%arg0: i32) -> (i32, i32) {
    %c0_i32 = arith.constant 0 : i32
    %c0_i32_0 = arith.constant 0 : i32
    %c0_i32_1 = arith.constant 0 : i32
    return %c0_i32, %c0_i32_0 : i32, i32
  }
  func.func @transform_5(%arg0: i32) -> (i32, i32) {
    %c0_i32 = arith.constant 0 : i32
    %c0_i32_0 = arith.constant 0 : i32
    return %c0_i32, %arg0 : i32, i32
  }
}

</mosaic_0001>

<llo_original>
// kernel: tpu_custom_call.1
$region0: #{tpu_custom_call.1}
  #allocation0 [shape = 'u32[]', space=smem, size = 0x4, offset = 0x4, fixed_abs, tag = 'smem constant byte address 0x4 - core index']
  #allocation1 [shape = 'u32[144,128]{1,0:T(1,128)}', space=vmem, size = 0x12000, scoped, tag = 'internal scratch']
  %s0 = inlined_call_operand.hbm [shape: bf16[8,16], index: 0, kind: input, shape index: {}]
  %s1 = inlined_call_operand.hbm [shape: bf16[16,32], index: 1, kind: input, shape index: {}]
  %s2 = inlined_call_operand.vmem [shape: f32[1,32], index: 2, kind: input, shape index: {}]
  %s3 = inlined_call_operand.vmem [shape: bf16[2,32], index: 3, kind: input, shape index: {}]
  %s4 = inlined_call_operand.vmem [shape: f32[2,1], index: 4, kind: input, shape index: {}]
  %s5 = inlined_call_operand.hbm [shape: f32[2,8], index: 5, kind: output, shape index: {}]
  %s6 = sld [smem:[#allocation0]]
  $region38: #{tpu_custom_call.1} parent=0
    _
  %s8 = ssub.s32 1, %s6
  %s9 = scalar_select 0, %s8, %s6
  $region1: #{tpu_custom_call.1} parent=0
    #allocation2 [shape = 'u8[2048]{0}', space=vmem, size = 0x800, scoped, tag = 'input window, operand 0, single buffered']
    #allocation3 [shape = 's32[1]{0}', space=sflag, size = 0x4, scoped, tag = 'scoped memory for tpu_custom_call.1']
    #allocation4 [shape = 's32[1]{0}', space=sflag, size = 0x4, scoped, tag = 'scoped memory for tpu_custom_call.1']
    #allocation5 [shape = 'u8[4096]{0}', space=vmem, size = 0x1000, scoped, tag = 'input window, operand 1, single buffered']
    #allocation6 [shape = 's32[1]{0}', space=sflag, size = 0x4, scoped, tag = 'scoped memory for tpu_custom_call.1']
    #allocation7 [shape = 'u8[1024]{0}', space=vmem, size = 0x400, scoped, tag = 'output window, operand 0, single buffered']
    %10 = vsyncpa [#allocation3], 0
    %11 = vsyncpa [#allocation6], 0
    %12 = vsyncpa [#allocation4], 0
    // Predicated region
    $region2: #{tpu_custom_call.1} parent=1 // pred_check
      _
    $region3: #{tpu_custom_call.1} parent=1 // pred_check_branch
      %14 = sbr.rel (0) target = $region5
    $region4: #{tpu_custom_call.1} parent=1 // pred_region
      %s16 = ssub.s32 64, 64
      %17 = vsyncadd [#allocation3], %s16
      %s19 = sshll.u32 [#allocation2], 4
      %s20 = int_to_ptr.vmem [resolvable:$true] %s19
      %22 = dma.hbm_to_vmem [thread:$0]  %s0, 64, %s20, [#allocation3]
    $region5: #{tpu_custom_call.1} parent=1 // pred_fallthru
      _
    // Predicated region
    $region6: #{tpu_custom_call.1} parent=1 // pred_check
      _
    $region7: #{tpu_custom_call.1} parent=1 // pred_check_branch
      %24 = sbr.rel (0) target = $region9
    $region8: #{tpu_custom_call.1} parent=1 // pred_region
      %s26 = ssub.s32 128, 128
      %27 = vsyncadd [#allocation6], %s26
      %s28 = sshll.u32 [#allocation5], 4
      %s29 = int_to_ptr.vmem [resolvable:$true] %s28
      %34 = dma.hbm_to_vmem [thread:$0]  %s1, 128, %s29, [#allocation6], 64, 64, 4
    $region9: #{tpu_custom_call.1} parent=1 // pred_fallthru
      _
    // Predicated region
    $region10: #{tpu_custom_call.1} parent=1 // pred_check
      _
    $region11: #{tpu_custom_call.1} parent=1 // pred_check_branch
      %36 = sbr.rel (0) target = $region13
    $region12: #{tpu_custom_call.1} parent=1 // pred_region
      _
    $region13: #{tpu_custom_call.1} parent=1 // pred_fallthru
      _
    // Predicated region
    $region14: #{tpu_custom_call.1} parent=1 // pred_check
      _
    $region15: #{tpu_custom_call.1} parent=1 // pred_check_branch
      %38 = sbr.rel (0) target = $region17
    $region16: #{tpu_custom_call.1} parent=1 // pred_region
      _
    $region17: #{tpu_custom_call.1} parent=1 // pred_fallthru
      _
    // Predicated region
    $region18: #{tpu_custom_call.1} parent=1 // pred_check
      _
    $region19: #{tpu_custom_call.1} parent=1 // pred_check_branch
      %40 = sbr.rel (0) target = $region21
    $region20: #{tpu_custom_call.1} parent=1 // pred_region
      _
    $region21: #{tpu_custom_call.1} parent=1 // pred_fallthru
      _
    // Predicated region
    $region22: #{tpu_custom_call.1} parent=1 // pred_check
      _
    $region23: #{tpu_custom_call.1} parent=1 // pred_check_branch
      %42 = sbr.rel (0) target = $region25
    $region24: #{tpu_custom_call.1} parent=1 // pred_region
      %43 = dma.done [#allocation3], 64
    $region25: #{tpu_custom_call.1} parent=1 // pred_fallthru
      _
    // Predicated region
    $region26: #{tpu_custom_call.1} parent=1 // pred_check
      _
    $region27: #{tpu_custom_call.1} parent=1 // pred_check_branch
      %45 = sbr.rel (0) target = $region29
    $region28: #{tpu_custom_call.1} parent=1 // pred_region
      %46 = dma.done [#allocation6], 128
    $region29: #{tpu_custom_call.1} parent=1 // pred_fallthru
      _
    %v48 = vld [vmem:[#allocation2] sm:$0xf]
    %v49 = vld [vmem:[#allocation5] sm:$0xf]
    %v50 = vld [vmem:[#allocation5 + $0x4] sm:$0xf]
    %v51 = vld [vmem:[%s2] sm:$0x1]
    %v53 = vlaneseq
    %v54 = vshrl.u32 %v53, 7
    %v55 = vsub.s32 0, %v54
    %v56 = vrot.slane %v51, %v55
    %v60 = vunpack.c.l.b16 %v49
    %v61 = vunpack.c.l.b16 %v50
    %v62 = vpack.c.b16 %v61, %v60
    %vm64 = vcmask 130048
    %v66 = vsel %vm64, %v48, 0
    %68 = vmatprep.subr.bf16.mxu0 0
    %69 = vmatpush1.bf16.msra.mxu0 %v62
    %70 = vmatprep.subr.bf16.mxu0 0
    %71 = vmatpush1.bf16.msra.mxu0 0
    %72 = vmatprep.subr.bf16.mxu0 0
    %73 = vmatpush1.bf16.msra.mxu0 0
    %74 = vmatprep.subr.bf16.mxu0 0
    %75 = vmatpush1.bf16.msra.mxu0 0
    %76 = vmatprep.subr.bf16.mxu0 0
    %77 = vmatpush1.bf16.msra.mxu0 0
    %78 = vmatprep.subr.bf16.mxu0 0
    %79 = vmatpush1.bf16.msra.mxu0 0
    %80 = vmatprep.subr.bf16.mxu0 0
    %81 = vmatpush1.bf16.msra.mxu0 0
    %82 = vmatprep.subr.bf16.mxu0 0
    %83 = vmatpush1.bf16.msra.mxu0 0
    %84 = vmatprep.subr.bf16.mxu0 0
    %85 = vmatpush1.bf16.msra.mxu0 0
    %86 = vmatprep.subr.bf16.mxu0 0
    %87 = vmatpush1.bf16.msra.mxu0 0
    %88 = vmatprep.subr.bf16.mxu0 0
    %89 = vmatpush1.bf16.msra.mxu0 0
    %90 = vmatprep.subr.bf16.mxu0 0
    %91 = vmatpush1.bf16.msra.mxu0 0
    %92 = vmatprep.subr.bf16.mxu0 0
    %93 = vmatpush1.bf16.msra.mxu0 0
    %94 = vmatprep.subr.bf16.mxu0 0
    %95 = vmatpush1.bf16.msra.mxu0 0
    %96 = vmatprep.subr.bf16.mxu0 0
    %97 = vmatpush1.bf16.msra.mxu0 0
    %98 = vmatprep.subr.bf16.mxu0 0
    %99 = vmatpush1.bf16.msra.mxu0 0
    %100 = vmatprep.mubr.bf16.mxu0 0
    %101 = vmatmul.mubr.bf16.gmra.mrb[0].mxu0 %v66
    %v102 = vpop.f32.mrb[0].mxu0
    %v103 = vadd.f32 %v56, %v102
    %v104 = vpop.f32.mrb[0].mxu0
    %v105 = vpop.f32.mrb[0].mxu0
    %v106 = vpop.f32.mrb[0].mxu0
    %107 = vdwg.mxu0
    %v108 = vmax.f32 %v103, 0.0
    %v109 = vld [vmem:[%s3] sm:$0x1]
    %v110 = vpack.c.bf16 %v108, %v108
    %v111 = vld [vmem:[%s4] sm:$0x3]
    %113 = vset.pattern.permute.xlu0 0
    %114 = vperm.xlu0 %113, %v111
    %v115 = vpop.permute.xlu0 %114
    %vm117 = vcmask 261120
    %v119 = vsel %vm117, %v109, 0
    %v122 = vsel %vm117, %v110, 0
    %124 = vmatprep.subr.bf16.mxu0 0
    %125 = vmatpush1.bf16.xpose.msra.mxu0 %v122
    %126 = vmatprep.subr.bf16.mxu0 0
    %127 = vmatpush1.bf16.xpose.msra.mxu0 0
    %128 = vmatprep.subr.bf16.mxu0 0
    %129 = vmatpush1.bf16.xpose.msra.mxu0 0
    %130 = vmatprep.subr.bf16.mxu0 0
    %131 = vmatpush1.bf16.xpose.msra.mxu0 0
    %132 = vmatprep.subr.bf16.mxu0 0
    %133 = vmatpush1.bf16.xpose.msra.mxu0 0
    %134 = vmatprep.subr.bf16.mxu0 0
    %135 = vmatpush1.bf16.xpose.msra.mxu0 0
    %136 = vmatprep.subr.bf16.mxu0 0
    %137 = vmatpush1.bf16.xpose.msra.mxu0 0
    %138 = vmatprep.subr.bf16.mxu0 0
    %139 = vmatpush1.bf16.xpose.msra.mxu0 0
    %140 = vmatprep.subr.bf16.mxu0 0
    %141 = vmatpush1.bf16.xpose.msra.mxu0 0
    %142 = vmatprep.subr.bf16.mxu0 0
    %143 = vmatpush1.bf16.xpose.msra.mxu0 0
    %144 = vmatprep.subr.bf16.mxu0 0
    %145 = vmatpush1.bf16.xpose.msra.mxu0 0
    %146 = vmatprep.subr.bf16.mxu0 0
    %147 = vmatpush1.bf16.xpose.msra.mxu0 0
    %148 = vmatprep.subr.bf16.mxu0 0
    %149 = vmatpush1.bf16.xpose.msra.mxu0 0
    %150 = vmatprep.subr.bf16.mxu0 0
    %151 = vmatpush1.bf16.xpose.msra.mxu0 0
    %152 = vmatprep.subr.bf16.mxu0 0
    %153 = vmatpush1.bf16.xpose.msra.mxu0 0
    %154 = vmatprep.subr.bf16.mxu0 0
    %155 = vmatpush1.bf16.xpose.msra.mxu0 0
    %156 = vmatprep.mubr.bf16.mxu0 0
    %157 = vmatmul.mubr.bf16.gmra.mrb[0].mxu0 %v119
    %v158 = vpop.f32.mrb[0].mxu0
    %v159 = vadd.f32 %v115, %v158
    %v160 = vpop.f32.mrb[0].mxu0
    %v161 = vpop.f32.mrb[0].mxu0
    %v162 = vpop.f32.mrb[0].mxu0
    %163 = vdwg.mxu0
    %v164 = vtanh.pop %v159
    %vm165 = vcmask 58368
    %166 = vst.msk [vmem:[#allocation7] sm:$0x3] %vm165, %v164
    // Predicated region
    $region30: #{tpu_custom_call.1} parent=1 // pred_check
      _
    $region31: #{tpu_custom_call.1} parent=1 // pred_check_branch
      %168 = sbr.rel (0) target = $region33
    $region32: #{tpu_custom_call.1} parent=1 // pred_region
      %s170 = ssub.s32 32, 32
      %171 = vsyncadd [#allocation4], %s170
      %s173 = sshll.u32 [#allocation7], 4
      %s174 = int_to_ptr.vmem [resolvable:$true] %s173
      %176 = dma.vmem_to_hbm [thread:$0]  %s174, 32, %s5, [#allocation4]
    $region33: #{tpu_custom_call.1} parent=1 // pred_fallthru
      _
    // Predicated region
    $region34: #{tpu_custom_call.1} parent=1 // pred_check
      _
    $region35: #{tpu_custom_call.1} parent=1 // pred_check_branch
      %178 = sbr.rel (0) target = $region37
    $region36: #{tpu_custom_call.1} parent=1 // pred_region
      %179 = dma.done [#allocation4], 32
    $region37: #{tpu_custom_call.1} parent=1 // pred_fallthru
      _
    %180 = vsyncpa [#allocation3], 1
    %181 = vsyncpa [#allocation6], 1
    %182 = vsyncpa [#allocation4], 1

</llo_original>
